<compile_context>
chip_gen: v7x
topology: tpu7x:2x2x1
jax: 0.10.0
libtpu: 0.0.40
codegen_flags: <defaults>
</compile_context>

<pallas_src>
import math

import jax
import jax.numpy as jnp
from jax.experimental import pallas as pl
from jax.experimental.pallas import tpu as pltpu

_LANES = 128
_MAX_BLOCK_ROWS = 2048      # (3, 2048, 128) f32 = 3 MiB/block; 12 MiB double-buffered.
_SMALL_B_FASTPATH = 4096    # below this, the fused jnp path beats pack+kernel+unpack.


def _rf_kernel(z_ref, o_ref):
    # Block: [3, ROWS, 128]. Each component is a dense [ROWS, 128] slab
    # (full sublane + lane utilization; unmasked stores).
    x1 = z_ref[0].astype(jnp.float32)
    x2 = z_ref[1].astype(jnp.float32)
    x3 = z_ref[2].astype(jnp.float32)

    x1sq = x1 * x1
    dx1 = x2 * (x3 - 1.0 + x1sq) + 0.87 * x1
    dx2 = x1 * (3.0 * x3 + 1.0 - x1sq) + 0.87 * x2
    dx3 = -2.0 * x3 * (1.1 + x1 * x2)

    o_ref[0] = dx1.astype(o_ref.dtype)
    o_ref[1] = dx2.astype(o_ref.dtype)
    o_ref[2] = dx3.astype(o_ref.dtype)


def _default_block_rows(rows: int) -> int:
    if rows <= 512:
        return rows                       # single full-extent block
    half = -(-rows // 2)                  # >=2 blocks so v7x's 2 TCs can shard "parallel"
    half = ((half + 15) // 16) * 16       # sublane-tile aligned (8 for f32, 16 for bf16)
    return min(_MAX_BLOCK_ROWS, half)


def ode_problem4_forward_packed(s, z_packed, *, block_rows=None):
    """Rabinovich-Fabrikant RHS on a component-major packed state.

    z_packed: [3, R, 128] (component, row, lane). Returns the same shape/dtype.
    This is the layout-native, zero-plumbing path integrators should use.
    """
    del s  # time is ignored by the vector field (as in the PyTorch module)
    assert z_packed.ndim == 3 and z_packed.shape[0] == 3, "expected [3, R, 128]"
    rows = z_packed.shape[1]
    lanes = z_packed.shape[2]

    if block_rows is None:
        block_rows = _default_block_rows(rows)
    block_rows = min(block_rows, rows)
    if block_rows < rows and block_rows % 8 != 0:
        block_rows = ((block_rows + 7) // 8) * 8  # keep (8,128)-tile divisibility

    grid = (pl.cdiv(rows, block_rows),)  # partial last block handled by Pallas masking

    return pl.pallas_call(
        _rf_kernel,
        out_shape=jax.ShapeDtypeStruct(z_packed.shape, z_packed.dtype),
        grid=grid,
        in_specs=[pl.BlockSpec((3, block_rows, lanes), lambda i: (0, i, 0))],
        out_specs=pl.BlockSpec((3, block_rows, lanes), lambda i: (0, i, 0)),
        compiler_params=pltpu.CompilerParams(
            dimension_semantics=("parallel",)),
    )(z_packed)


def _reference(s, z):
    """XLA-fused jnp implementation; also the small-batch fast path."""
    x1, x2, x3 = z[..., :1], z[..., 1:2], z[..., -1:]
    dx1 = x2 * (x3 - 1.0 + x1 ** 2) + 0.87 * x1
    dx2 = x1 * (3.0 * x3 + 1.0 - x1 ** 2) + 0.87 * x2
    dx3 = -2.0 * x3 * (1.1 + x1 * x2)
    return jnp.concatenate([dx1, dx2, dx3], axis=-1)


def ode_problem4_forward(s, z, *, use_pallas=None):
    """PyTorch-compatible ODEProblem4.forward(s, z) with z of shape [..., 3]."""
    orig_shape = z.shape
    assert orig_shape[-1] == 3, "state dimension must be 3"
    b = math.prod(orig_shape[:-1]) if len(orig_shape) > 1 else 1

    if use_pallas is None:
        use_pallas = b >= _SMALL_B_FASTPATH
    if not use_pallas:
        # Small batch: launch overhead + layout plumbing would dominate the
        # ~10 flops/element RHS; the XLA-fused path is strictly faster here.
        return _reference(s, z)

    # TODO(synk): integrators should carry the state in the packed [3, R, 128]
    # layout and call ode_problem4_forward_packed directly (ideally fusing the
    # whole RK step / time loop into one kernel). The transpose+pad below is
    # pure [..., 3]-interface plumbing and adds extra HBM traffic to an
    # otherwise HBM-bound kernel.
    z2d = z.reshape(-1, 3)
    rows = -(-b // _LANES)
    b_pad = rows * _LANES
    zt = z2d.T                                   # [3, B]
    if b_pad != b:
        zt = jnp.pad(zt, ((0, 0), (0, b_pad - b)))  # zero-pad: safe, no NaN paths
    zp = zt.reshape(3, rows, _LANES)

    op = ode_problem4_forward_packed(None, zp)

    out2d = op.reshape(3, b_pad)[:, :b].T        # back to [B, 3]
    return out2d.reshape(orig_shape)


if __name__ == "__main__":
    key = jax.random.PRNGKey(0)
    k1, k2, k3, k4 = jax.random.split(key, 4)
    s = jnp.float32(0.0)  # unused by the vector field; kept for API parity

    def _packed_ref(zp):
        return jnp.moveaxis(_reference(s, jnp.moveaxis(zp, 0, -1)), -1, 0)

    # 1) Packed layout, single full-extent block (the integrator-native path).
    zp_small = jax.random.normal(k1, (3, 8, 128), dtype=jnp.float32)
    out_p = jax.block_until_ready(ode_problem4_forward_packed(s, zp_small))
    ref_p = _packed_ref(zp_small)
    assert out_p.shape == ref_p.shape and out_p.dtype == zp_small.dtype
    assert jnp.allclose(out_p, ref_p, atol=1e-5, rtol=1e-5)

    # 2) Packed layout, multi-step grid with a partial (masked) last block.
    zp_multi = jax.random.normal(k2, (3, 19, 128), dtype=jnp.float32)
    out_m = jax.block_until_ready(
        ode_problem4_forward_packed(s, zp_multi, block_rows=8))
    assert jnp.allclose(out_m, _packed_ref(zp_multi), atol=1e-5, rtol=1e-5)

    # 3) PyTorch-compatible [..., 3] interface, tiny batch -> jnp fast path.
    z_small = jax.random.normal(k3, (8, 3), dtype=jnp.float32)
    out_s = jax.block_until_ready(ode_problem4_forward(s, z_small))
    assert out_s.shape == z_small.shape and out_s.dtype == z_small.dtype
    assert jnp.allclose(out_s, _reference(s, z_small), atol=1e-5, rtol=1e-5)

    # 4) [..., 3] interface forced through the Pallas path (B=305, padded to 384).
    z_mid = jax.random.normal(k4, (5, 61, 3), dtype=jnp.float32)
    out_f = jax.block_until_ready(ode_problem4_forward(s, z_mid, use_pallas=True))
    assert out_f.shape == z_mid.shape and out_f.dtype == z_mid.dtype
    assert jnp.allclose(out_f, _reference(s, z_mid), atol=1e-5, rtol=1e-5)

    print("KERNEL_OK")
</pallas_src>

<mosaic_0001>
module attributes {stable_mosaic.version = 11 : i64} {
  func.func @_rf_kernel(%arg0: i32, %arg1: memref<3x8x128xf32, #tpu.memory_space<vmem>>, %arg2: memref<3x8x128xf32, #tpu.memory_space<vmem>>) attributes {dimension_semantics = [#tpu.dimension_semantics<parallel>], iteration_bounds = array<i64: 1>, scalar_prefetch = 0 : i64, scratch_operands = 0 : i64, tpu.core_type = #tpu.core_type<tc>, window_params = [{transform_indices = @transform_0, window_bounds = array<i64: 3, 8, 128>}, {transform_indices = @transform_1, window_bounds = array<i64: 3, 8, 128>}]} {
    %c0 = arith.constant 0 : index
    %c0_0 = arith.constant 0 : index
    %c0_1 = arith.constant 0 : index
    %0 = vector.load %arg1[%c0, %c0_0, %c0_1] : memref<3x8x128xf32, #tpu.memory_space<vmem>>, vector<1x8x128xf32>
    %1 = vector.shape_cast %0 : vector<1x8x128xf32> to vector<8x128xf32>
    %c1 = arith.constant 1 : index
    %c0_2 = arith.constant 0 : index
    %c0_3 = arith.constant 0 : index
    %2 = vector.load %arg1[%c1, %c0_2, %c0_3] : memref<3x8x128xf32, #tpu.memory_space<vmem>>, vector<1x8x128xf32>
    %3 = vector.shape_cast %2 : vector<1x8x128xf32> to vector<8x128xf32>
    %c2 = arith.constant 2 : index
    %c0_4 = arith.constant 0 : index
    %c0_5 = arith.constant 0 : index
    %4 = vector.load %arg1[%c2, %c0_4, %c0_5] : memref<3x8x128xf32, #tpu.memory_space<vmem>>, vector<1x8x128xf32>
    %5 = vector.shape_cast %4 : vector<1x8x128xf32> to vector<8x128xf32>
    %6 = arith.mulf %1, %1 : vector<8x128xf32>
    %cst = arith.constant 1.000000e+00 : f32
    %7 = vector.broadcast %cst : f32 to vector<8x128xf32>
    %8 = arith.subf %5, %7 : vector<8x128xf32>
    %9 = arith.addf %8, %6 : vector<8x128xf32>
    %10 = arith.mulf %3, %9 : vector<8x128xf32>
    %cst_6 = arith.constant 8.700000e-01 : f32
    %11 = vector.broadcast %cst_6 : f32 to vector<8x128xf32>
    %12 = arith.mulf %11, %1 : vector<8x128xf32>
    %13 = arith.addf %10, %12 : vector<8x128xf32>
    %cst_7 = arith.constant 3.000000e+00 : f32
    %14 = vector.broadcast %cst_7 : f32 to vector<8x128xf32>
    %15 = arith.mulf %14, %5 : vector<8x128xf32>
    %cst_8 = arith.constant 1.000000e+00 : f32
    %16 = vector.broadcast %cst_8 : f32 to vector<8x128xf32>
    %17 = arith.addf %15, %16 : vector<8x128xf32>
    %18 = arith.subf %17, %6 : vector<8x128xf32>
    %19 = arith.mulf %1, %18 : vector<8x128xf32>
    %cst_9 = arith.constant 8.700000e-01 : f32
    %20 = vector.broadcast %cst_9 : f32 to vector<8x128xf32>
    %21 = arith.mulf %20, %3 : vector<8x128xf32>
    %22 = arith.addf %19, %21 : vector<8x128xf32>
    %cst_10 = arith.constant -2.000000e+00 : f32
    %23 = vector.broadcast %cst_10 : f32 to vector<8x128xf32>
    %24 = arith.mulf %23, %5 : vector<8x128xf32>
    %25 = arith.mulf %1, %3 : vector<8x128xf32>
    %cst_11 = arith.constant 1.100000e+00 : f32
    %26 = vector.broadcast %cst_11 : f32 to vector<8x128xf32>
    %27 = arith.addf %26, %25 : vector<8x128xf32>
    %28 = arith.mulf %24, %27 : vector<8x128xf32>
    %c0_12 = arith.constant 0 : index
    %c0_13 = arith.constant 0 : index
    %c0_14 = arith.constant 0 : index
    %29 = vector.load %arg2[%c0_12, %c0_13, %c0_14] : memref<3x8x128xf32, #tpu.memory_space<vmem>>, vector<1x8x128xf32>
    %30 = vector.shape_cast %29 : vector<1x8x128xf32> to vector<8x128xf32>
    %31 = vector.shape_cast %13 : vector<8x128xf32> to vector<1x8x128xf32>
    tpu.vector_store %arg2[%c0_12, %c0_13, %c0_14], %31 {strides = array<i32>} : memref<3x8x128xf32, #tpu.memory_space<vmem>>, vector<1x8x128xf32>,
    %c1_15 = arith.constant 1 : index
    %c0_16 = arith.constant 0 : index
    %c0_17 = arith.constant 0 : index
    %32 = vector.load %arg2[%c1_15, %c0_16, %c0_17] : memref<3x8x128xf32, #tpu.memory_space<vmem>>, vector<1x8x128xf32>
    %33 = vector.shape_cast %32 : vector<1x8x128xf32> to vector<8x128xf32>
    %34 = vector.shape_cast %22 : vector<8x128xf32> to vector<1x8x128xf32>
    tpu.vector_store %arg2[%c1_15, %c0_16, %c0_17], %34 {strides = array<i32>} : memref<3x8x128xf32, #tpu.memory_space<vmem>>, vector<1x8x128xf32>,
    %c2_18 = arith.constant 2 : index
    %c0_19 = arith.constant 0 : index
    %c0_20 = arith.constant 0 : index
    %35 = vector.load %arg2[%c2_18, %c0_19, %c0_20] : memref<3x8x128xf32, #tpu.memory_space<vmem>>, vector<1x8x128xf32>
    %36 = vector.shape_cast %35 : vector<1x8x128xf32> to vector<8x128xf32>
    %37 = vector.shape_cast %28 : vector<8x128xf32> to vector<1x8x128xf32>
    tpu.vector_store %arg2[%c2_18, %c0_19, %c0_20], %37 {strides = array<i32>} : memref<3x8x128xf32, #tpu.memory_space<vmem>>, vector<1x8x128xf32>,
    return
  }
  func.func @transform_0(%arg0: i32) -> (i32, i32, i32) {
    %c0_i32 = arith.constant 0 : i32
    %c0_i32_0 = arith.constant 0 : i32
    %c0_i32_1 = arith.constant 0 : i32
    return %c0_i32, %arg0, %c0_i32_0 : i32, i32, i32
  }
  func.func @transform_1(%arg0: i32) -> (i32, i32, i32) {
    %c0_i32 = arith.constant 0 : i32
    %c0_i32_0 = arith.constant 0 : i32
    %c0_i32_1 = arith.constant 0 : i32
    return %c0_i32, %arg0, %c0_i32_0 : i32, i32, i32
  }
}

</mosaic_0001>

<llo_original>
// kernel: tpu_custom_call.1
$region0: #{tpu_custom_call.1}
  #allocation0 [shape = 'u32[]', space=smem, size = 0x4, offset = 0x4, fixed_abs, tag = 'smem constant byte address 0x4 - core index']
  #allocation1 [shape = 'u32[144,128]{1,0:T(1,128)}', space=vmem, size = 0x12000, scoped, tag = 'internal scratch']
  %s0 = inlined_call_operand.hbm [shape: f32[3,8,128], index: 0, kind: input, shape index: {}]
  %s1 = inlined_call_operand.hbm [shape: f32[3,8,128], index: 1, kind: output, shape index: {}]
  %s2 = sld [smem:[#allocation0]]
  $region18: #{tpu_custom_call.1} parent=0
    _
  %s4 = ssub.s32 1, %s2
  %s5 = scalar_select 0, %s4, %s2
  $region1: #{tpu_custom_call.1} parent=0
    #allocation2 [shape = 'u8[12288]{0}', space=vmem, size = 0x3000, scoped, tag = 'input window, operand 0, single buffered']
    #allocation3 [shape = 's32[1]{0}', space=sflag, size = 0x4, scoped, tag = 'scoped memory for tpu_custom_call.1']
    #allocation4 [shape = 's32[1]{0}', space=sflag, size = 0x4, scoped, tag = 'scoped memory for tpu_custom_call.1']
    #allocation5 [shape = 'u8[12288]{0}', space=vmem, size = 0x3000, scoped, tag = 'output window, operand 0, single buffered']
    %6 = vsyncpa [#allocation3], 0
    %7 = vsyncpa [#allocation4], 0
    // Predicated region
    $region2: #{tpu_custom_call.1} parent=1 // pred_check
      _
    $region3: #{tpu_custom_call.1} parent=1 // pred_check_branch
      %9 = sbr.rel (0) target = $region5
    $region4: #{tpu_custom_call.1} parent=1 // pred_region
      %s11 = ssub.s32 384, 384
      %12 = vsyncadd [#allocation3], %s11
      %s13 = sshll.u32 [#allocation2], 4
      %s14 = int_to_ptr.vmem [resolvable:$true] %s13
      %19 = dma.hbm_to_vmem [thread:$0]  %s0, 384, %s14, [#allocation3], 128, 128, 8
    $region5: #{tpu_custom_call.1} parent=1 // pred_fallthru
      _
    // Predicated region
    $region6: #{tpu_custom_call.1} parent=1 // pred_check
      _
    $region7: #{tpu_custom_call.1} parent=1 // pred_check_branch
      %21 = sbr.rel (0) target = $region9
    $region8: #{tpu_custom_call.1} parent=1 // pred_region
      %22 = dma.done [#allocation3], 384
    $region9: #{tpu_custom_call.1} parent=1 // pred_fallthru
      _
    %v23 = vld [vmem:[#allocation2] sm:$0xff]
    %s24 = scalar_lea.vmem [#allocation2], 8
    %v25 = vld [vmem:[%s24] sm:$0xff]
    %s26 = scalar_lea.vmem [#allocation2], 16
    %v27 = vld [vmem:[%s26] sm:$0xff]
    %v28 = vmul.f32 %v23, %v23
    %v29 = vsub.f32 %v27, 1.0
    %v30 = vadd.f32 %v29, %v28
    %v31 = vmul.f32 %v25, %v30
    %v32 = vmul.f32 %v23, 0.87
    %v33 = vadd.f32 %v31, %v32
    %v34 = vmul.f32 %v27, 3.0
    %v35 = vadd.f32 %v34, 1.0
    %v36 = vsub.f32 %v35, %v28
    %v37 = vmul.f32 %v23, %v36
    %v38 = vmul.f32 %v25, 0.87
    %v39 = vadd.f32 %v37, %v38
    %v40 = vmul.f32 %v27, -2.0
    %v41 = vmul.f32 %v23, %v25
    %v42 = vadd.f32 %v41, 1.1
    %v43 = vmul.f32 %v40, %v42
    %44 = vst [vmem:[#allocation5] sm:$0xff] %v33
    %s45 = scalar_lea.vmem [#allocation5], 8
    %46 = vst [vmem:[%s45] sm:$0xff] %v39
    %s47 = scalar_lea.vmem [#allocation5], 16
    %48 = vst [vmem:[%s47] sm:$0xff] %v43
    // Predicated region
    $region10: #{tpu_custom_call.1} parent=1 // pred_check
      _
    $region11: #{tpu_custom_call.1} parent=1 // pred_check_branch
      %50 = sbr.rel (0) target = $region13
    $region12: #{tpu_custom_call.1} parent=1 // pred_region
      %s52 = ssub.s32 384, 384
      %53 = vsyncadd [#allocation4], %s52
      %s54 = sshll.u32 [#allocation5], 4
      %s55 = int_to_ptr.vmem [resolvable:$true] %s54
      %60 = dma.vmem_to_hbm [thread:$0]  %s55, 384, %s1, [#allocation4], 128, 128, 8
    $region13: #{tpu_custom_call.1} parent=1 // pred_fallthru
      _
    // Predicated region
    $region14: #{tpu_custom_call.1} parent=1 // pred_check
      _
    $region15: #{tpu_custom_call.1} parent=1 // pred_check_branch
      %62 = sbr.rel (0) target = $region17
    $region16: #{tpu_custom_call.1} parent=1 // pred_region
      %63 = dma.done [#allocation4], 384
    $region17: #{tpu_custom_call.1} parent=1 // pred_fallthru
      _
    %64 = vsyncpa [#allocation3], 1
    %65 = vsyncpa [#allocation4], 1

</llo_original>
